<compile_context>
chip_gen: v7x
topology: tpu7x:2x2x1
jax: 0.10.0
libtpu: 0.0.40
codegen_flags: <defaults>
</compile_context>

<pallas_src>
import jax
import jax.numpy as jnp
from jax.experimental import pallas as pl
from jax.experimental.pallas import tpu as pltpu


# ----------------------------------------------------------------------------
# Tiling helper: H*W lives on the lane axis; pick a lane-dense tile
# (multiple of 128) that divides HW, capped so double-buffered blocks stay
# tiny even with v7x's smaller VMEM.
# ----------------------------------------------------------------------------
def _pick_hw_tile(hw, cap=2048):
    if hw <= cap:
        return hw
    for t in (2048, 1024, 512, 256, 128):
        if t <= cap and hw % t == 0:
            return t
    # TODO(synk): ragged HW (not a multiple of 128) falls back to one block.
    return hw


# ----------------------------------------------------------------------------
# Kernel 1: per-batch mean flow speed  (tiled reduction over HW)
#   speed = sqrt(u^2 + v^2); mean over all H*W pixels of each batch element.
# ----------------------------------------------------------------------------
def _make_speed_mean_kernel(inv_hw):
    def kernel(mot_ref, mean_ref, acc_ref):
        ti = pl.program_id(1)
        m = mot_ref[0]                                         # (2, thw)
        speed = jnp.sqrt(m[0:1, :] ** 2 + m[1:2, :] ** 2)      # (1, thw)
        part = jnp.sum(speed, axis=1, keepdims=True)           # (1, 1)

        @pl.when(ti == 0)
        def _():
            acc_ref[...] = jnp.zeros_like(acc_ref)

        acc_ref[...] += part

        @pl.when(ti == pl.num_programs(1) - 1)
        def _():
            mean_ref[0] = jnp.broadcast_to(acc_ref[...] * inv_hw, (1, 128))

    return kernel


def speed_mean_pallas(motion_flat):
    bs, c, hw = motion_flat.shape
    assert c == 2
    thw = _pick_hw_tile(hw)
    n_t = hw // thw
    return pl.pallas_call(
        _make_speed_mean_kernel(1.0 / hw),
        out_shape=jax.ShapeDtypeStruct((bs, 1, 128), jnp.float32),
        grid=(bs, n_t),
        in_specs=[pl.BlockSpec((1, 2, thw), lambda b, t: (b, 0, t))],
        out_specs=pl.BlockSpec((1, 1, 128), lambda b, t: (b, 0, 0)),
        scratch_shapes=[pltpu.VMEM((1, 1), jnp.float32)],
        compiler_params=pltpu.CompilerParams(
            dimension_semantics=("parallel", "arbitrary")),
    )(motion_flat)


# ----------------------------------------------------------------------------
# Kernel 2: fused forward
#   moving-region mask + (implicit concat via split weights) + 1x1-conv MLP
#   (cin -> hidden -> 2, ReLU + tanh) as VPU broadcast-FMAs with HW on lanes,
#   fused *div_flow scale and PSNR SSE accumulation (finalized on last tile).
# TODO(synk): the real SPADEUnet4MaskMotion architecture is not provided; a
#             deterministic two-layer 1x1-conv stand-in is used.
# ----------------------------------------------------------------------------
def _make_fused_kernel(use_mask, use_hint, div_flow, inv_hw):
    def kernel(*refs):
        it = iter(refs)
        img_ref = next(it)
        mot_ref = next(it)
        mean_ref = next(it) if use_mask else None
        hint_ref = next(it) if use_hint else None
        w1_ref = next(it)       # (hidden, cin)   columns follow concat order
        b1_ref = next(it)       # (hidden, 1)
        w2t_ref = next(it)      # (hidden, 2)
        b2_ref = next(it)       # (1, 2)
        pred_ref = next(it)     # (1, 2, thw)
        mask_ref = next(it) if use_mask else None
        psnr_ref = next(it)     # (1, 1, 128)
        sse_acc = next(it)      # (1, 1) VMEM scratch

        ti = pl.program_id(1)
        img = img_ref[0]                                       # (3, thw)
        mot = mot_ref[0]                                       # (2, thw)

        # ---- layer 1: unrolled channel loop of broadcast-FMAs -------------
        col = 0
        h = b1_ref[...]                                        # (hidden, 1)
        for c in range(3):                                     # image channels
            h = h + w1_ref[:, col:col + 1] * img[c:c + 1, :]
            col += 1
        if use_mask:
            # moving-region mask: 1 - (speed < 0.1 * mean)  ==  speed >= 0.1*mean
            speed = jnp.sqrt(mot[0:1, :] ** 2 + mot[1:2, :] ** 2)   # (1, thw)
            mean_b = mean_ref[0][:, 0:1]                            # (1, 1)
            mask = (speed >= 0.1 * mean_b).astype(jnp.float32)      # (1, thw)
            h = h + w1_ref[:, col:col + 1] * mask
            col += 1
            mask_ref[0] = mask
        if use_hint:
            hint = hint_ref[0]                                 # (2, thw)
            for c in range(2):
                h = h + w1_ref[:, col:col + 1] * hint[c:c + 1, :]
                col += 1
        h = jnp.maximum(h, 0.0)                                # (hidden, thw)

        # ---- layer 2 (cout=2): multiply + sublane reduce, lane-dense ------
        p0 = jnp.tanh(jnp.sum(w2t_ref[:, 0:1] * h, axis=0, keepdims=True)
                      + b2_ref[:, 0:1])                        # (1, thw)
        p1 = jnp.tanh(jnp.sum(w2t_ref[:, 1:2] * h, axis=0, keepdims=True)
                      + b2_ref[:, 1:2])                        # (1, thw)
        pred_ref[0, 0:1, :] = p0
        pred_ref[0, 1:2, :] = p1

        # ---- fused PSNR accumulation on pred * div_flow vs gt motion ------
        d0 = p0 * div_flow - mot[0:1, :]
        d1 = p1 * div_flow - mot[1:2, :]
        part = jnp.sum(d0 * d0 + d1 * d1, axis=1, keepdims=True)    # (1, 1)

        @pl.when(ti == 0)
        def _():
            sse_acc[...] = jnp.zeros_like(sse_acc)

        sse_acc[...] += part

        @pl.when(ti == pl.num_programs(1) - 1)
        def _():
            # mse = sum_C (err^2) averaged over H*W  (matches reference PSNR)
            mse = sse_acc[...] * inv_hw                        # (1, 1)
            psnr = 10.0 * jnp.log10(1.0 / mse)
            psnr_ref[0] = jnp.broadcast_to(psnr, (1, 128))

    return kernel


def fused_forward_pallas(img_flat, mot_flat, mean_speed, hint_flat,
                         w1, b1, w2t, b2, *, use_mask, use_hint, div_flow):
    bs, _, hw = img_flat.shape
    thw = _pick_hw_tile(hw)
    n_t = hw // thw
    hidden, cin = w1.shape
    cout = w2t.shape[1]

    inputs = [img_flat, mot_flat]
    in_specs = [pl.BlockSpec((1, 3, thw), lambda b, t: (b, 0, t)),
                pl.BlockSpec((1, 2, thw), lambda b, t: (b, 0, t))]
    if use_mask:
        inputs.append(mean_speed)
        in_specs.append(pl.BlockSpec((1, 1, 128), lambda b, t: (b, 0, 0)))
    if use_hint:
        inputs.append(hint_flat)
        in_specs.append(pl.BlockSpec((1, 2, thw), lambda b, t: (b, 0, t)))
    inputs += [w1, b1, w2t, b2]
    in_specs += [pl.BlockSpec((hidden, cin), lambda b, t: (0, 0)),
                 pl.BlockSpec((hidden, 1), lambda b, t: (0, 0)),
                 pl.BlockSpec((hidden, cout), lambda b, t: (0, 0)),
                 pl.BlockSpec((1, cout), lambda b, t: (0, 0))]

    out_shapes = [jax.ShapeDtypeStruct((bs, 2, hw), jnp.float32)]
    out_specs = [pl.BlockSpec((1, 2, thw), lambda b, t: (b, 0, t))]
    if use_mask:
        out_shapes.append(jax.ShapeDtypeStruct((bs, 1, hw), jnp.float32))
        out_specs.append(pl.BlockSpec((1, 1, thw), lambda b, t: (b, 0, t)))
    out_shapes.append(jax.ShapeDtypeStruct((bs, 1, 128), jnp.float32))
    out_specs.append(pl.BlockSpec((1, 1, 128), lambda b, t: (b, 0, 0)))

    kernel = _make_fused_kernel(use_mask, use_hint, float(div_flow), 1.0 / hw)
    return pl.pallas_call(
        kernel,
        out_shape=tuple(out_shapes),
        grid=(bs, n_t),
        in_specs=in_specs,
        out_specs=tuple(out_specs),
        scratch_shapes=[pltpu.VMEM((1, 1), jnp.float32)],
        compiler_params=pltpu.CompilerParams(
            dimension_semantics=("parallel", "arbitrary")),
    )(*inputs)


# ----------------------------------------------------------------------------
# Module wrapper (mirrors SPADEUnetMaskMotion.forward)
# ----------------------------------------------------------------------------
class SPADEUnetMaskMotionPallas:
    def __init__(self, config):
        self.config = config
        self.div_flow = 20.0 if 'div_flow' not in config else config['div_flow']
        self.use_mask = bool(config['use_mask_as_motion_input'])
        self.use_hint = bool(config['use_hint_as_motion_input'])
        channels_in = 3
        if self.use_mask:
            channels_in += 1
        if self.use_hint:
            channels_in += 2
        self.channels_in = channels_in
        self.channels_out = 2
        self.hidden = 32
        # TODO(synk): SPADEUnet4MaskMotion weights are not provided; use a
        #             deterministic synthetic init for the stand-in MLP.
        k1, k2 = jax.random.split(jax.random.PRNGKey(42))
        self.w1 = 0.1 * jax.random.normal(k1, (self.hidden, channels_in), jnp.float32)
        self.b1 = jnp.zeros((self.hidden, 1), jnp.float32)
        self.w2t = 0.1 * jax.random.normal(k2, (self.hidden, self.channels_out), jnp.float32)
        self.b2 = jnp.zeros((1, self.channels_out), jnp.float32)

    def forward(self, batch):
        image = batch['images'][0]                     # (bs, 3, W, W) NCHW
        bs = image.shape[0]
        W = self.config['W']
        hw = W * W
        gt_motion = batch['motions']

        # Channel-major flattening only (no transposes): NCHW -> (bs, C, H*W)
        img_flat = image.reshape(bs, 3, hw).astype(jnp.float32)
        gm_flat = gt_motion.reshape(bs, 2, -1).astype(jnp.float32)
        assert gm_flat.shape[2] == hw, "motion spatial size must match W*W"

        mean_speed = None
        if self.use_mask:
            mean_speed = speed_mean_pallas(gm_flat)    # Pallas kernel 1

        hint = None
        hint_flat = None
        use_hint_eff = self.use_mask and self.use_hint
        if use_hint_eff:
            hint_flat = batch['hints'].reshape(bs, 2, hw).astype(jnp.float32)
            hint = hint_flat.reshape(bs, 2, W, W)

        outs = fused_forward_pallas(                   # Pallas kernel 2 (fused)
            img_flat, gm_flat, mean_speed, hint_flat,
            self.w1, self.b1, self.w2t, self.b2,
            use_mask=self.use_mask, use_hint=use_hint_eff,
            div_flow=self.div_flow)

        if self.use_mask:
            pred_flat, mask_flat, psnr_pb = outs
            moving_region_mask = mask_flat.reshape(bs, 1, W, W)
        else:
            pred_flat, psnr_pb = outs
            moving_region_mask = None

        pred_motion = pred_flat.reshape(bs, 2, W, W)
        psnr = jnp.mean(psnr_pb[:, 0, 0])              # mean over bs scalars only

        if gt_motion.ndim <= 3:
            gt_motion_out = gm_flat.reshape(
                bs, 2, self.config['motionH'], self.config['motionW'])
        else:
            gt_motion_out = gt_motion

        # TODO(synk): MotionLoss definition is not provided in the reference;
        #             only the PSNR metric is reproduced here.
        loss = {'PSNR_motion': psnr}

        pred_dict = {'PredMotion': pred_motion, 'GTMotion': gt_motion_out,
                     'InputImg': image}
        if self.use_mask:
            pred_dict['MovingMask'] = moving_region_mask
        if use_hint_eff:
            pred_dict['HintMotion'] = hint
        return loss, pred_dict


if __name__ == "__main__":
    config = {
        'use_mask_as_motion_input': True,
        'use_hint_as_motion_input': True,
        'W': 16,
        'motionH': 16,
        'motionW': 16,
        'div_flow': 20.0,
    }
    model = SPADEUnetMaskMotionPallas(config)

    bs, W = 2, 16
    k_img, k_mot, k_hint = jax.random.split(jax.random.PRNGKey(0), 3)
    image = jax.random.normal(k_img, (bs, 3, W, W), jnp.float32)
    motions = jax.random.normal(k_mot, (bs, 2, W * W), jnp.float32)
    hints = jax.random.normal(k_hint, (bs, 2, W * W), jnp.float32)
    batch = {'images': [image], 'motions': motions, 'hints': hints}

    loss, pred_dict = model.forward(batch)
    jax.block_until_ready(loss['PSNR_motion'])
    jax.block_until_ready(pred_dict['PredMotion'])
    jax.block_until_ready(pred_dict['MovingMask'])
    print("KERNEL_OK")
</pallas_src>

<mosaic_0001>
module attributes {stable_mosaic.version = 11 : i64} {
  func.func @kernel(%arg0: i32, %arg1: i32, %arg2: memref<1x2x256xf32, #tpu.memory_space<vmem>>, %arg3: memref<1x1x128xf32, #tpu.memory_space<vmem>>, %arg4: memref<1x1xf32, #tpu.memory_space<vmem>>) attributes {dimension_semantics = [#tpu.dimension_semantics<parallel>, #tpu.dimension_semantics<arbitrary>], iteration_bounds = array<i64: 2, 1>, scalar_prefetch = 0 : i64, scratch_operands = 1 : i64, tpu.core_type = #tpu.core_type<tc>, window_params = [{transform_indices = @transform_0, window_bounds = array<i64: 1, 2, 256>}, {transform_indices = @transform_1, window_bounds = array<i64: 1, 1, 128>}]} {
    %c0 = arith.constant 0 : index
    %c0_0 = arith.constant 0 : index
    %c0_1 = arith.constant 0 : index
    %0 = vector.load %arg2[%c0, %c0_0, %c0_1] : memref<1x2x256xf32, #tpu.memory_space<vmem>>, vector<1x2x256xf32>
    %1 = vector.shape_cast %0 : vector<1x2x256xf32> to vector<2x256xf32>
    %2 = vector.extract_strided_slice %1 {offsets = [0, 0], sizes = [1, 256], strides = [1, 1]} : vector<2x256xf32> to vector<1x256xf32>
    %3 = arith.mulf %2, %2 : vector<1x256xf32>
    %4 = vector.extract_strided_slice %1 {offsets = [1, 0], sizes = [1, 256], strides = [1, 1]} : vector<2x256xf32> to vector<1x256xf32>
    %5 = arith.mulf %4, %4 : vector<1x256xf32>
    %6 = arith.addf %3, %5 : vector<1x256xf32>
    %7 = math.sqrt %6 : vector<1x256xf32>
    %cst = arith.constant dense<0.000000e+00> : vector<1xf32>
    %8 = vector.multi_reduction <add>, %7, %cst [1] : vector<1x256xf32> to vector<1xf32>
    %9 = vector.shape_cast %8 : vector<1xf32> to vector<1x1xf32>
    %c0_i32 = arith.constant 0 : i32
    %10 = arith.cmpi eq, %arg1, %c0_i32 : i32
    %11 = arith.extui %10 : i1 to i32
    %c0_i32_2 = arith.constant 0 : i32
    %12 = arith.cmpi ne, %11, %c0_i32_2 : i32
    scf.if %12 {
      %cst_9 = arith.constant 0.000000e+00 : f32
      %19 = vector.broadcast %cst_9 : f32 to vector<1x1xf32>
      %c0_10 = arith.constant 0 : index
      %c0_11 = arith.constant 0 : index
      %20 = vector.load %arg4[%c0_10, %c0_11] : memref<1x1xf32, #tpu.memory_space<vmem>>, vector<1x1xf32>
      tpu.vector_store %arg4[%c0_10, %c0_11], %19 {strides = array<i32>} : memref<1x1xf32, #tpu.memory_space<vmem>>, vector<1x1xf32>,
    } else {
    }
    %c0_3 = arith.constant 0 : index
    %c0_4 = arith.constant 0 : index
    %13 = vector.load %arg4[%c0_3, %c0_4] : memref<1x1xf32, #tpu.memory_space<vmem>>, vector<1x1xf32>
    %14 = arith.addf %13, %9 : vector<1x1xf32>
    %c0_5 = arith.constant 0 : index
    %c0_6 = arith.constant 0 : index
    %15 = vector.load %arg4[%c0_5, %c0_6] : memref<1x1xf32, #tpu.memory_space<vmem>>, vector<1x1xf32>
    tpu.vector_store %arg4[%c0_5, %c0_6], %14 {strides = array<i32>} : memref<1x1xf32, #tpu.memory_space<vmem>>, vector<1x1xf32>,
    %c0_i32_7 = arith.constant 0 : i32
    %16 = arith.cmpi eq, %arg1, %c0_i32_7 : i32
    %17 = arith.extui %16 : i1 to i32
    %c0_i32_8 = arith.constant 0 : i32
    %18 = arith.cmpi ne, %17, %c0_i32_8 : i32
    scf.if %18 {
      %c0_9 = arith.constant 0 : index
      %c0_10 = arith.constant 0 : index
      %19 = vector.load %arg4[%c0_9, %c0_10] : memref<1x1xf32, #tpu.memory_space<vmem>>, vector<1x1xf32>
      %cst_11 = arith.constant 3.906250e-03 : f32
      %20 = vector.broadcast %cst_11 : f32 to vector<1x1xf32>
      %21 = arith.mulf %19, %20 : vector<1x1xf32>
      %22 = vector.shape_cast %21 : vector<1x1xf32> to vector<1x1xf32>
      %23 = vector.broadcast %22 : vector<1x1xf32> to vector<1x128xf32>
      %c0_12 = arith.constant 0 : index
      %c0_13 = arith.constant 0 : index
      %c0_14 = arith.constant 0 : index
      %24 = vector.load %arg3[%c0_12, %c0_13, %c0_14] : memref<1x1x128xf32, #tpu.memory_space<vmem>>, vector<1x1x128xf32>
      %25 = vector.shape_cast %24 : vector<1x1x128xf32> to vector<1x128xf32>
      %26 = vector.shape_cast %23 : vector<1x128xf32> to vector<1x1x128xf32>
      tpu.vector_store %arg3[%c0_12, %c0_13, %c0_14], %26 {strides = array<i32>} : memref<1x1x128xf32, #tpu.memory_space<vmem>>, vector<1x1x128xf32>,
    } else {
    }
    return
  }
  func.func @transform_0(%arg0: i32, %arg1: i32) -> (i32, i32, i32) {
    %c0_i32 = arith.constant 0 : i32
    %c0_i32_0 = arith.constant 0 : i32
    return %arg0, %c0_i32, %arg1 : i32, i32, i32
  }
  func.func @transform_1(%arg0: i32, %arg1: i32) -> (i32, i32, i32) {
    %c0_i32 = arith.constant 0 : i32
    %c0_i32_0 = arith.constant 0 : i32
    %c0_i32_1 = arith.constant 0 : i32
    return %arg0, %c0_i32, %c0_i32_0 : i32, i32, i32
  }
}

</mosaic_0001>

<llo_original>
// kernel: tpu_custom_call.1
$region0: #{tpu_custom_call.1}
  #allocation0 [shape = 'u32[]', space=smem, size = 0x4, offset = 0x4, fixed_abs, tag = 'smem constant byte address 0x4 - core index']
  #allocation1 [shape = 'u32[144,128]{1,0:T(1,128)}', space=vmem, size = 0x12000, scoped, tag = 'internal scratch']
  #allocation2 [shape = 'f32[1,1]{1,0:T(1,128)}', space=vmem, size = 0x200, scoped, tag = 'scratch operand']
  %s0 = inlined_call_operand.hbm [shape: f32[2,2,256], index: 0, kind: input, shape index: {}]
  %s1 = inlined_call_operand.hbm [shape: f32[2,1,128], index: 1, kind: output, shape index: {}]
  %s2 = sld [smem:[#allocation0]]
  $region49: #{tpu_custom_call.1} parent=0
    _
  %s4 = ssub.s32 1, %s2
  %s5 = scalar_select 0, %s4, %s2
  $region1: #{tpu_custom_call.1} parent=0
    #allocation3 [shape = 'u8[4096]{0}', space=vmem, size = 0x1000, scoped, tag = 'input window, operand 0']
    #allocation4 [shape = 's32[2]{0}', space=sflag, size = 0x8, scoped, tag = 'scoped memory for tpu_custom_call.1']
    #allocation5 [shape = 's32[2]{0}', space=sflag, size = 0x8, scoped, tag = 'scoped memory for tpu_custom_call.1']
    #allocation6 [shape = 'u8[1024]{0}', space=vmem, size = 0x400, scoped, tag = 'output window, operand 0']
    %6 = vsyncpa [#allocation4], 0
    %s7 = scalar_lea.sflag [#allocation4], 1
    %8 = vsyncpa %s7, 0
    %9 = vsyncpa [#allocation5], 0
    %s10 = scalar_lea.sflag [#allocation5], 1
    %11 = vsyncpa %s10, 0
    loop: start=0, step=1, limit=4
    $region2: #{tpu_custom_call.1} parent=1 // loop_pre_header
      _
    $region3: #{tpu_custom_call.1} parent=1 // loop_header
      %s13 = sphi 0, %s17
      %p14 = scmp.ge.s32.totalorder %s13, 4
      %s20 = sphi 0, %s32
      %s21 = sphi 0, %s28
      %s22 = sphi 0, %s20
      %s23 = sphi 0, %s21
      %s24 = sphi 0, %s22
      %s25 = sphi 0, %s23
      %s37 = sphi 0, %s39
      %s40 = sphi 0, %s37
      %s41 = sphi 0, %s40
      %s57 = sphi 0, %s41
      %s63 = sphi 0, %s65
      %s66 = sphi 0, %s63
      %s67 = sphi 0, %s66
      %s83 = sphi 0, %s67
    $region4: #{tpu_custom_call.1} parent=1 // loop_header_branch
      %16 = sbr.rel (%p14) target = $region8
    $region5: #{tpu_custom_call.1} parent=1 // loop_body
      %s18 = ssub.s32 %s13, 1
      %s19 = ssub.s32 %s13, 2
      %s26 = sadd.s32 1, %s21
      %p27 = scmp.ge.s32.totalorder %s26, 1
      %s28 = scalar_select %p27, 0, %s26
      %s29 = sadd.s32 1, %s20
      %s30 = scalar_select %p27, %s29, %s20
      %p31 = scmp.ge.s32.totalorder %s30, 2
      %s32 = scalar_select %p31, 0, %s30
      %s33 = ssub.s32 %s20, %s32
      %s34 = ssub.s32 %s21, %s28
      %s35 = sor.u32 %s33, %s34
      %p36 = scmp.eq.s32.totalorder %s35, 0
      %s38 = sadd.s32 %s37, 1
      %s39 = scalar_select %p36, %s37, %s38
      %p42 = pneg %p36
      %p43 = scmp.eq.s32.totalorder %s13, 1
      %p44 = por %p42, %p43
      %p45 = scmp.ne.s32.totalorder %s37, %s40
      %p46 = scmp.eq.s32.totalorder %s13, 0
      %p47 = por %p45, %p46
      %p48 = scmp.ne.s32.totalorder %s37, %s40
      %p49 = scmp.eq.s32.totalorder %s18, 1
      %p50 = por %p48, %p49
      %p51 = scmp.ne.s32.totalorder %s40, %s41
      %p52 = scmp.eq.s32.totalorder %s18, 0
      %p53 = por %p51, %p52
      %p54 = scmp.ne.s32.totalorder %s40, %s41
      %p55 = scmp.eq.s32.totalorder %s19, 1
      %p56 = por %p54, %p55
      %p58 = scmp.ne.s32.totalorder %s41, %s57
      %p59 = scmp.eq.s32.totalorder %s19, 0
      %p60 = por %p58, %p59
      %s61 = ssub.s32 %s20, %s32
      %p62 = scmp.eq.s32.totalorder %s61, 0
      %s64 = sadd.s32 %s63, 1
      %s65 = scalar_select %p62, %s63, %s64
      %p68 = pneg %p62
      %p69 = scmp.eq.s32.totalorder %s13, 1
      %p70 = por %p68, %p69
      %p71 = scmp.ne.s32.totalorder %s63, %s66
      %p72 = scmp.eq.s32.totalorder %s13, 0
      %p73 = por %p71, %p72
      %p74 = scmp.ne.s32.totalorder %s63, %s66
      %p75 = scmp.eq.s32.totalorder %s18, 1
      %p76 = por %p74, %p75
      %p77 = scmp.ne.s32.totalorder %s66, %s67
      %p78 = scmp.eq.s32.totalorder %s18, 0
      %p79 = por %p77, %p78
      %p80 = scmp.ne.s32.totalorder %s66, %s67
      %p81 = scmp.eq.s32.totalorder %s19, 1
      %p82 = por %p80, %p81
      %p84 = scmp.ne.s32.totalorder %s67, %s83
      %p85 = scmp.eq.s32.totalorder %s19, 0
      %p86 = por %p84, %p85
      %p87 = scmp.le.s32.totalorder 1, %s13
      %p88 = scmp.lt.s32.totalorder %s13, 3
      %p89 = pnand %p87, %p88
      %p90 = pneg %p89
      // Predicated region
      $region9: #{tpu_custom_call.1} parent=5 // pred_check
        _
      $region10: #{tpu_custom_call.1} parent=5 // pred_check_branch
        %92 = sbr.rel (%p89) target = $region12
      $region11: #{tpu_custom_call.1} parent=5 // pred_region
        %s93 = ssub.s32 %s13, 1
      $region12: #{tpu_custom_call.1} parent=5 // pred_fallthru
        _
      %p94 = scmp.lt.s32.totalorder %s13, 2
      // Predicated region
      $region13: #{tpu_custom_call.1} parent=5 // pred_check
        %p95 = pneg %p94
      $region14: #{tpu_custom_call.1} parent=5 // pred_check_branch
        %97 = sbr.rel (%p95) target = $region16
      $region15: #{tpu_custom_call.1} parent=5 // pred_region
        // Predicated region
        $region17: #{tpu_custom_call.1} parent=15 // pred_check
          %p98 = pneg %p47
        $region18: #{tpu_custom_call.1} parent=15 // pred_check_branch
          %100 = sbr.rel (%p98) target = $region20
        $region19: #{tpu_custom_call.1} parent=15 // pred_region
          %s101 = sand.u32 %s37, 1
          %s102 = scalar_lea.sflag [#allocation4], %s101
          %s103 = sand.u32 %s37, 1
          %s104 = smul.addr %s103, 4
          %s105 = scalar_lea.vmem [#allocation3], %s104
          %s106 = smul.u32 2, %s21
          %s108 = ssub.s32 64, 64
          %109 = vsyncadd %s102, %s108
          %s110 = smul.addr %s20, 2
          %s111 = sadd.s32 %s106, %s110
          %s112 = smul.addr %s111, 32
          %s113 = scalar_lea.hbm %s0, %s112
          %s115 = sshll.u32 %s105, 4
          %s116 = int_to_ptr.vmem [resolvable:$true] %s115
          %118 = dma.hbm_to_vmem [thread:$0]  %s113, 64, %s116, %s102
        $region20: #{tpu_custom_call.1} parent=15 // pred_fallthru
          _
      $region16: #{tpu_custom_call.1} parent=5 // pred_fallthru
        _
      %p119 = scmp.le.s32.totalorder 1, %s13
      %p120 = scmp.lt.s32.totalorder %s13, 3
      %p121 = pnand %p119, %p120
      %p122 = pneg %p121
      // Predicated region
      $region21: #{tpu_custom_call.1} parent=5 // pred_check
        _
      $region22: #{tpu_custom_call.1} parent=5 // pred_check_branch
        %124 = sbr.rel (%p121) target = $region24
      $region23: #{tpu_custom_call.1} parent=5 // pred_region
        %s125 = ssub.s32 %s13, 1
        %s126 = sand.u32 %s40, 1
        %s127 = scalar_lea.sflag [#allocation4], %s126
        %s128 = sand.u32 %s40, 1
        %s129 = smul.addr %s128, 4
        %s130 = scalar_lea.vmem [#allocation3], %s129
        // Predicated region
        $region25: #{tpu_custom_call.1} parent=23 // pred_check
          %p131 = pneg %p53
        $region26: #{tpu_custom_call.1} parent=23 // pred_check_branch
          %133 = sbr.rel (%p131) target = $region28
        $region27: #{tpu_custom_call.1} parent=23 // pred_region
          %134 = dma.done %s127, 64
        $region28: #{tpu_custom_call.1} parent=23 // pred_fallthru
          _
        %s135 = sand.u32 %s40, 1
        %s136 = scalar_lea.sflag [#allocation4], %s135
        %s137 = sand.u32 %s40, 1
        %s138 = smul.addr %s137, 4
        %s139 = scalar_lea.vmem [#allocation3], %s138
        %p140 = pneg %p53
        %p141 = pneg %p50
        %p142 = pneg %p79
        %p143 = pneg %p76
        %s144 = sand.u32 %s66, 1
        %s145 = scalar_lea.sflag [#allocation5], %s144
        %s146 = sand.u32 %s66, 1
        %s147 = scalar_lea.vmem [#allocation6], %s146
        %s148 = smul.u32 2, %s23
        %v149 = vld [vmem:[%s130] sm:$0xf]
        %v150 = vmul.f32 %v149, %v149
        %v152 = vrot.slane %v150, 7
        %v153 = vrot.slane %v152, 2
        %v155 = vadd.f32 %v150, %v153
        %v156 = vrsqrt.pop %v155
        %v157 = vmul.f32 %v155, %v156
        %vm158 = vcmp.eq.f32.partialorder %v155, inf
        %v159 = vsel %vm158, %v155, %v157
        %vm160 = vcmp.eq.f32.partialorder %v155, 0.0
        %v161 = vand.u32 %v155, 2147483648
        %v162 = vsel %vm160, %v161, %v159
        %v164 = vlaneseq
        %v165 = vshrl.u32 %v164, 7
        %v166 = vsub.s32 0, %v165
        %v167 = vrot.slane %v162, %v166
        %v168 = vlaneseq
        %v169 = vshrl.u32 %v168, 7
        %v170 = vsub.s32 2, %v169
        %v171 = vrot.slane %v162, %v170
        %vm174 = vcmask 1040384
        %v175 = vsel %vm174, %v167, 0.0
        %v176 = vsel %vm174, %v171, 0.0
        %v177 = vadd.f32 %v175, %v176
        %178 = vadd.xlane.f32.xlu0 %v177
        %v179 = vpop.xlane.xlu0 %178
        %p180 = scmp.eq.s32.totalorder %s23, 0
        // Predicated region
        $region29: #{tpu_custom_call.1} parent=23 // pred_check
          %p181 = pneg %p180
        $region30: #{tpu_custom_call.1} parent=23 // pred_check_branch
          %183 = sbr.rel (%p181) target = $region32
        $region31: #{tpu_custom_call.1} parent=23 // pred_region
          %vm184 = vcmask 0
          %185 = vst.msk [vmem:[#allocation2] sm:$0x1] %vm184, 0.0
        $region32: #{tpu_custom_call.1} parent=23 // pred_fallthru
          _
        %v186 = vld [vmem:[#allocation2] sm:$0x1]
        %v187 = vadd.f32 %v186, %v179
        %vm188 = vcmask 0
        %189 = vst.msk [vmem:[#allocation2] sm:$0x1] %vm188, %v187
        // Predicated region
        $region33: #{tpu_custom_call.1} parent=23 // pred_check
          %p190 = pneg %p180
        $region34: #{tpu_custom_call.1} parent=23 // pred_check_branch
          %192 = sbr.rel (%p190) target = $region36
        $region35: #{tpu_custom_call.1} parent=23 // pred_region
          %v193 = vld [vmem:[#allocation2] sm:$0x1]
          %v194 = vmul.f32 %v193, 0.00390625
          %196 = vset.pattern.permute.xlu0 0
          %197 = vperm.xlu0 %196, %v194
          %v198 = vpop.permute.xlu0 %197
          %v200 = vlaneseq
          %v201 = vshrl.u32 %v200, 7
          %v202 = vsub.s32 0, %v201
          %v203 = vrot.slane %v198, %v202
          %204 = vst [vmem:[%s147] sm:$0x1] %v203
        $region36: #{tpu_custom_call.1} parent=23 // pred_fallthru
          _
        %s205 = sand.u32 %s66, 1
        %s206 = scalar_lea.sflag [#allocation5], %s205
        %s207 = sand.u32 %s66, 1
        %s208 = scalar_lea.vmem [#allocation6], %s207
        // Predicated region
        $region37: #{tpu_custom_call.1} parent=23 // pred_check
          %p209 = pneg %p76
        $region38: #{tpu_custom_call.1} parent=23 // pred_check_branch
          %211 = sbr.rel (%p209) target = $region40
        $region39: #{tpu_custom_call.1} parent=23 // pred_region
          %s213 = ssub.s32 16, 16
          %214 = vsyncadd %s206, %s213
          %s215 = smul.addr %s22, 16
          %s216 = scalar_lea.hbm %s1, %s215
          %s218 = sshll.u32 %s208, 4
          %s219 = int_to_ptr.vmem [resolvable:$true] %s218
          %221 = dma.vmem_to_hbm [thread:$0]  %s219, 16, %s216, %s206
        $region40: #{tpu_custom_call.1} parent=23 // pred_fallthru
          _
      $region24: #{tpu_custom_call.1} parent=5 // pred_fallthru
        _
      %p222 = scmp.le.s32.totalorder 2, %s13
      // Predicated region
      $region41: #{tpu_custom_call.1} parent=5 // pred_check
        %p223 = pneg %p222
      $region42: #{tpu_custom_call.1} parent=5 // pred_check_branch
        %225 = sbr.rel (%p223) target = $region44
      $region43: #{tpu_custom_call.1} parent=5 // pred_region
        %s226 = ssub.s32 %s13, 2
        // Predicated region
        $region45: #{tpu_custom_call.1} parent=43 // pred_check
          %p227 = pneg %p82
        $region46: #{tpu_custom_call.1} parent=43 // pred_check_branch
          %229 = sbr.rel (%p227) target = $region48
        $region47: #{tpu_custom_call.1} parent=43 // pred_region
          %s230 = sand.u32 %s67, 1
          %s231 = scalar_lea.sflag [#allocation5], %s230
          %s232 = sand.u32 %s67, 1
          %s233 = scalar_lea.vmem [#allocation6], %s232
          %234 = dma.done %s231, 16
        $region48: #{tpu_custom_call.1} parent=43 // pred_fallthru
          _
      $region44: #{tpu_custom_call.1} parent=5 // pred_fallthru
        _
    $region6: #{tpu_custom_call.1} parent=1 // loop_footer
      %s17 = sadd.s32 1, %s13
    $region7: #{tpu_custom_call.1} parent=1 // loop_footer_branch
      %12 = sbr.rel target = $region3
    $region8: #{tpu_custom_call.1} parent=1 // loop_exit
      _
    %235 = vsyncpa [#allocation4], 1
    %s236 = scalar_lea.sflag [#allocation4], 1
    %237 = vsyncpa %s236, 1
    %238 = vsyncpa [#allocation5], 1
    %s239 = scalar_lea.sflag [#allocation5], 1
    %240 = vsyncpa %s239, 1

</llo_original>
